<compile_context>
chip_gen: v5e
topology: v5e:2x2
jax: 0.10.0
libtpu: 0.0.40
codegen_flags: <defaults>
</compile_context>

<pallas_src>
import jax
import jax.numpy as jnp
from jax.experimental import pallas as pl
from jax.experimental.pallas import tpu as pltpu


def _mlm_tile_kernel(x_ref, w_ref, b_ref, o_ref):
    """One (tm, tn) logits tile: out = x @ w + b.

    x_ref: (tm, D)  bf16 activations
    w_ref: (D, tn)  bf16 weight columns (pre-transposed in the wrapper)
    b_ref: (1, tn)  f32 bias slice
    o_ref: (tm, tn) logits tile
    """
    acc = jnp.dot(x_ref[...], w_ref[...], preferred_element_type=jnp.float32)
    o_ref[...] = (acc + b_ref[...]).astype(o_ref.dtype)


_TM_MAX = 512    # activation rows per tile (multiple of 8)
_TN_MAX = 2048   # vocab columns per tile (multiple of 128)


def bert_head(hiddens, w_mlm, b_mlm, w_cls, b_cls, *, mlm_out_dtype=None):
    """Pallas implementation of bertHead.forward.

    hiddens : (B, S, D) float32
    w_mlm   : (voc, D)  (PyTorch Linear weight layout)
    b_mlm   : (voc,)
    w_cls   : (2, D)
    b_cls   : (2,)
    returns (CLS, mask_pred) with shapes (B, 2) and (B, S-1, voc)
    """
    B, S, D = hiddens.shape
    voc = w_mlm.shape[0]
    M = B * (S - 1)
    out_dtype = jnp.dtype(mlm_out_dtype) if mlm_out_dtype is not None else hiddens.dtype

    # -------- MLM head: tiled (M, voc) GEMM, K = D un-gridded (fits VMEM) --------
    # Slice/reshape/cast and transpose/cast each fuse into a single XLA pass
    # under jit; bf16 MXU inputs, f32 accumulation.
    x_mlm = hiddens[:, 1:].reshape(M, D).astype(jnp.bfloat16)          # (M, D)
    w_mlm_t = w_mlm.T.astype(jnp.bfloat16)                             # (D, voc)
    b_mlm2 = b_mlm.reshape(1, voc).astype(jnp.float32)                 # (1, voc)

    # Full extent when small (always layout-legal), otherwise 8/128-aligned caps.
    tm = M if M <= _TM_MAX else _TM_MAX
    tn = voc if voc <= _TN_MAX else _TN_MAX
    n_m = pl.cdiv(M, tm)
    n_v = pl.cdiv(voc, tn)
    # Vocab tiles OUTER, M tiles INNER: the weight/bias block index depends only on
    # the outer index, so the big weight tile stays VMEM-resident across the inner
    # M sweep and only the activation tile is re-fetched per step.
    grid = (n_v, n_m)

    out_isize = jnp.dtype(out_dtype).itemsize
    # Double-buffered per-tile VMEM footprint + headroom for Mosaic scratch.
    footprint = 2 * (tm * D * 2 + D * tn * 2 + tn * 4 + tm * tn * out_isize)
    vmem_limit = int(min(max(footprint + (8 << 20), 32 << 20), 60 << 20))

    bytes_accessed = (voc * D * 2                 # weight: streamed once
                      + n_v * M * D * 2           # activations: once per vocab pass
                      + voc * 4                   # bias
                      + M * voc * out_isize)      # logits writeback

    mlm_flat = pl.pallas_call(
        _mlm_tile_kernel,
        out_shape=jax.ShapeDtypeStruct((M, voc), out_dtype),
        grid=grid,
        in_specs=[
            pl.BlockSpec((tm, D), lambda j, i: (i, 0)),   # activations: inner axis
            pl.BlockSpec((D, tn), lambda j, i: (0, j)),   # weight: resident per j
            pl.BlockSpec((1, tn), lambda j, i: (0, j)),   # bias: resident per j
        ],
        out_specs=pl.BlockSpec((tm, tn), lambda j, i: (i, j)),
        compiler_params=pltpu.CompilerParams(
            dimension_semantics=("parallel", "parallel"),
            vmem_limit_bytes=vmem_limit),
        cost_estimate=pl.CostEstimate(
            flops=2 * M * voc * D, transcendentals=0,
            bytes_accessed=bytes_accessed),
    )(x_mlm, w_mlm_t, b_mlm2)
    mask_pred = mlm_flat.reshape(B, S - 1, voc)

    # -------- CLS head: (B, D) @ (D, 2) -- plain JAX per perf review -------------
    # Too tiny for a kernel launch + 128-lane padding to pay off; XLA handles it.
    cls_out = (jnp.dot(hiddens[:, 0], w_cls.T,
                       preferred_element_type=jnp.float32)
               + b_cls).astype(hiddens.dtype)

    return cls_out, mask_pred


if __name__ == "__main__":
    B, S, D, VOC = 2, 8, 32, 64

    key = jax.random.PRNGKey(0)
    k_h, k_wm, k_bm, k_wc, k_bc = jax.random.split(key, 5)

    hiddens = jax.random.normal(k_h, (B, S, D), dtype=jnp.float32)
    # nn.Linear shapes: weight (out, in), bias (out,)
    w_mlm = jax.random.normal(k_wm, (VOC, D), dtype=jnp.float32) * 0.02
    b_mlm = jax.random.normal(k_bm, (VOC,), dtype=jnp.float32) * 0.02
    w_cls = jax.random.normal(k_wc, (2, D), dtype=jnp.float32) * 0.02
    b_cls = jax.random.normal(k_bc, (2,), dtype=jnp.float32) * 0.02

    cls_out, mask_pred = jax.jit(bert_head)(hiddens, w_mlm, b_mlm, w_cls, b_cls)
    jax.block_until_ready((cls_out, mask_pred))

    assert cls_out.shape == (B, 2)
    assert mask_pred.shape == (B, S - 1, VOC)

    # References. CLS is f32 end-to-end (tight check); the MLM head feeds the MXU
    # bf16 inputs with f32 accumulation, so compare tightly against a bf16-input
    # reference and loosely against the pure-f32 reference.
    ref_cls = hiddens[:, 0] @ w_cls.T + b_cls
    ref_mask_bf16 = jnp.einsum(
        "bsd,vd->bsv",
        hiddens[:, 1:].astype(jnp.bfloat16), w_mlm.astype(jnp.bfloat16),
        preferred_element_type=jnp.float32) + b_mlm
    ref_mask_f32 = jnp.einsum("bsd,vd->bsv", hiddens[:, 1:], w_mlm) + b_mlm

    assert jnp.allclose(cls_out, ref_cls, atol=1e-5, rtol=1e-5)
    assert jnp.allclose(mask_pred, ref_mask_bf16, atol=5e-3, rtol=5e-3)
    assert jnp.allclose(mask_pred, ref_mask_f32, atol=2e-2, rtol=2e-2)

    print("KERNEL_OK")
</pallas_src>

<mosaic_0001>
module attributes {stable_mosaic.version = 11 : i64} {
  func.func @_mlm_tile_kernel(%arg0: i32, %arg1: i32, %arg2: memref<14x32xbf16, #tpu.memory_space<vmem>>, %arg3: memref<32x64xbf16, #tpu.memory_space<vmem>>, %arg4: memref<1x64xf32, #tpu.memory_space<vmem>>, %arg5: memref<14x64xf32, #tpu.memory_space<vmem>>) attributes {dimension_semantics = [#tpu.dimension_semantics<parallel>, #tpu.dimension_semantics<parallel>], iteration_bounds = array<i64: 1, 1>, scalar_prefetch = 0 : i64, scratch_operands = 0 : i64, tpu.core_type = #tpu.core_type<tc>, window_params = [{transform_indices = @transform_0, window_bounds = array<i64: 14, 32>}, {transform_indices = @transform_1, window_bounds = array<i64: 32, 64>}, {transform_indices = @transform_2, window_bounds = array<i64: 1, 64>}, {transform_indices = @transform_3, window_bounds = array<i64: 14, 64>}]} {
    %c0 = arith.constant 0 : index
    %c0_0 = arith.constant 0 : index
    %0 = vector.load %arg2[%c0, %c0_0] : memref<14x32xbf16, #tpu.memory_space<vmem>>, vector<14x32xbf16>
    %c0_1 = arith.constant 0 : index
    %c0_2 = arith.constant 0 : index
    %1 = vector.load %arg3[%c0_1, %c0_2] : memref<32x64xbf16, #tpu.memory_space<vmem>>, vector<32x64xbf16>
    %cst = arith.constant dense<0.000000e+00> : vector<14x64xf32>
    %2 = tpu.matmul %0, %1, %cst {dimension_numbers = #tpu.dot_dimension_numbers<[1], [0], [0], [1], [0, 0, 1, 1], [], []>} : vector<14x32xbf16>, vector<32x64xbf16>, vector<14x64xf32> -> vector<14x64xf32>
    %c0_3 = arith.constant 0 : index
    %c0_4 = arith.constant 0 : index
    %3 = vector.load %arg4[%c0_3, %c0_4] : memref<1x64xf32, #tpu.memory_space<vmem>>, vector<1x64xf32>
    %4 = vector.broadcast %3 : vector<1x64xf32> to vector<14x64xf32>
    %5 = arith.addf %2, %4 : vector<14x64xf32>
    %c0_5 = arith.constant 0 : index
    %c0_6 = arith.constant 0 : index
    %6 = vector.load %arg5[%c0_5, %c0_6] : memref<14x64xf32, #tpu.memory_space<vmem>>, vector<14x64xf32>
    tpu.vector_store %arg5[%c0_5, %c0_6], %5 {strides = array<i32>} : memref<14x64xf32, #tpu.memory_space<vmem>>, vector<14x64xf32>,
    return
  }
  func.func @transform_0(%arg0: i32, %arg1: i32) -> (i32, i32) {
    %c0_i32 = arith.constant 0 : i32
    %c0_i32_0 = arith.constant 0 : i32
    return %arg1, %c0_i32 : i32, i32
  }
  func.func @transform_1(%arg0: i32, %arg1: i32) -> (i32, i32) {
    %c0_i32 = arith.constant 0 : i32
    %c0_i32_0 = arith.constant 0 : i32
    return %c0_i32, %arg0 : i32, i32
  }
  func.func @transform_2(%arg0: i32, %arg1: i32) -> (i32, i32) {
    %c0_i32 = arith.constant 0 : i32
    %c0_i32_0 = arith.constant 0 : i32
    return %c0_i32, %arg0 : i32, i32
  }
  func.func @transform_3(%arg0: i32, %arg1: i32) -> (i32, i32) {
    %c0_i32 = arith.constant 0 : i32
    return %arg1, %arg0 : i32, i32
  }
}

</mosaic_0001>

<llo_original>
// kernel: bert_head.1
$region0: #{bert_head.1}
  #allocation0 [shape = 'u32[]', space=smem, size = 0x4, offset = 0x4, fixed_abs, tag = 'smem constant byte address 0x4 - core index']
  #allocation1 [shape = 'u32[72,128]{1,0:T(1,128)}', space=vmem, size = 0x9000, scoped, tag = 'internal scratch']
  %s0 = inlined_call_operand.vmem [shape: bf16[14,32], index: 0, kind: input, shape index: {}]
  %s1 = inlined_call_operand.vmem [shape: bf16[32,64], index: 1, kind: input, shape index: {}]
  %s2 = inlined_call_operand.vmem [shape: f32[1,64], index: 2, kind: input, shape index: {}]
  %s3 = inlined_call_operand.vmem [shape: f32[14,64], index: 3, kind: output, shape index: {}]
  %s4 = sld [smem:[#allocation0]]
  $region22: #{bert_head.1} parent=0
    _
  %s6 = ssub.s32 1, %s4
  %s7 = scalar_select 0, %s6, %s4
  // Predicated region
  $region2: #{bert_head.1} parent=0 // pred_check
    _
  $region3: #{bert_head.1} parent=0 // pred_check_branch
    %9 = sbr.rel (0) target = $region5
  $region4: #{bert_head.1} parent=0 // pred_region
    _
  $region5: #{bert_head.1} parent=0 // pred_fallthru
    _
  // Predicated region
  $region6: #{bert_head.1} parent=0 // pred_check
    _
  $region7: #{bert_head.1} parent=0 // pred_check_branch
    %11 = sbr.rel (0) target = $region9
  $region8: #{bert_head.1} parent=0 // pred_region
    _
  $region9: #{bert_head.1} parent=0 // pred_fallthru
    _
  // Predicated region
  $region10: #{bert_head.1} parent=0 // pred_check
    _
  $region11: #{bert_head.1} parent=0 // pred_check_branch
    %13 = sbr.rel (0) target = $region13
  $region12: #{bert_head.1} parent=0 // pred_region
    _
  $region13: #{bert_head.1} parent=0 // pred_fallthru
    _
  %v15 = vld [vmem:[%s0] sm:$0xf]
  %v16 = vld [vmem:[%s0 + $0x4] sm:$0x7]
  %v17 = vld [vmem:[%s1] sm:$0xf]
  %v18 = vld [vmem:[%s1 + $0x4] sm:$0xf]
  %v19 = vld [vmem:[%s1 + $0x8] sm:$0xf]
  %v20 = vld [vmem:[%s1 + $0xc] sm:$0xf]
  %v21 = vld [vmem:[%s2] sm:$0x1]
  %v23 = vperm.slane %v21, 0
  %v27 = vunpack.c.l.b16 %v15
  %v28 = vunpack.c.l.b16 %v16
  %v29 = vpack.c.b16 %v28, %v27
  %v34 = vunpack.c.l.b16 %v17
  %v35 = vunpack.c.l.b16 %v18
  %v36 = vunpack.c.l.b16 %v19
  %v37 = vunpack.c.l.b16 %v20
  %v38 = vpack.c.b16 %v35, %v34
  %v39 = vpack.c.b16 %v37, %v36
  %vm42 = vcmask 261120
  %v44 = vsel %vm42, %v29, 0
  %46 = vmatpush.bf16.msra.mxu0 0
  %47 = vmatpush.bf16.msra.mxu0 0
  %48 = vmatpush.bf16.msra.mxu0 0
  %49 = vmatpush.bf16.msra.mxu0 0
  %50 = vmatpush.bf16.msra.mxu0 0
  %51 = vmatpush.bf16.msra.mxu0 0
  %52 = vmatpush.bf16.msra.mxu0 %v39
  %53 = vmatpush.bf16.msra.mxu0 %v38
  %54 = vmatmul.bf16.gmra.mxu0 %v44
  %v55 = vpop.f32.mrf.mxu0
  %v56 = vadd.f32 %v23, %v55
  %v57 = vpop.f32.mrf.mxu0
  %v58 = vadd.f32 %v23, %v57
  %59 = vdwg.mxu0
  %vm60 = vcmask 523264
  %61 = vst.msk [vmem:[%s3] sm:$0xff] %vm60, %v56
  %vm62 = vcmask 521216
  %63 = vst.msk [vmem:[%s3 + $0x8] sm:$0x3f] %vm62, %v58
  // Predicated region
  $region14: #{bert_head.1} parent=0 // pred_check
    _
  $region15: #{bert_head.1} parent=0 // pred_check_branch
    %65 = sbr.rel (0) target = $region17
  $region16: #{bert_head.1} parent=0 // pred_region
    _
  $region17: #{bert_head.1} parent=0 // pred_fallthru
    _
  // Predicated region
  $region18: #{bert_head.1} parent=0 // pred_check
    _
  $region19: #{bert_head.1} parent=0 // pred_check_branch
    %67 = sbr.rel (0) target = $region21
  $region20: #{bert_head.1} parent=0 // pred_region
    _
  $region21: #{bert_head.1} parent=0 // pred_fallthru
    _

</llo_original>
